<compile_context>
chip_gen: v6e
topology: v6e:2x2x1
jax: 0.10.0
libtpu: 0.0.40
codegen_flags: <defaults>
</compile_context>

<pallas_src>
import functools

import jax
import jax.numpy as jnp
from jax.experimental import pallas as pl
from jax.experimental.pallas import tpu as pltpu

_LANE = 128          # padded lane width for all hidden / class dimensions
_SUBPACK = 16        # bf16 sublane packing granularity


def _round_up(n, m):
    return ((n + m - 1) // m) * m


def _mlp_softmax_kernel(x_ref, w_ref, b_ref, o_ref):
    f = x_ref.shape[1]                                    # padded feature count (x16)

    # Weight slabs (bf16), packed as: rows [0,128) = W2, [128,256) = W3,
    # [256, 256+f) = W1.  All slice starts/sizes are bf16-pack aligned.
    w2 = w_ref[0:_LANE, :]                                # (128, 128)
    w3 = w_ref[_LANE:2 * _LANE, :]                        # (128, 128)
    w1 = w_ref[2 * _LANE:2 * _LANE + f, :]                # (f,   128)

    # Biases (f32), read once per tile: row 0 = b1, row 1 = b2,
    # row 2 = b3 with -1e30 on the padded class lanes (softmax mask).
    b = b_ref[...]                                        # (8, 128)
    b1, b2, b3 = b[0:1, :], b[1:2, :], b[2:3, :]

    x = x_ref[...].astype(jnp.bfloat16)                   # (tb, f)

    # fc1 + ReLU   (dropout == identity at inference)
    h1 = jnp.dot(x, w1, preferred_element_type=jnp.float32)           # (tb, 128)
    h1 = jnp.maximum(h1 + b1, 0.0)

    # fc2 + ReLU
    h2 = jnp.dot(h1.astype(jnp.bfloat16), w2,
                 preferred_element_type=jnp.float32)                   # (tb, 128)
    h2 = jnp.maximum(h2 + b2, 0.0)

    # fc3 (+ lane mask folded into b3 for padded class columns)
    logits = jnp.dot(h2.astype(jnp.bfloat16), w3,
                     preferred_element_type=jnp.float32) + b3          # (tb, 128)

    # softmax over dim=1, numerically stable; padded lanes -> exp == 0 exactly
    m = jnp.max(logits, axis=-1, keepdims=True)
    e = jnp.exp(logits - m)
    s = jnp.sum(e, axis=-1, keepdims=True)
    o_ref[...] = e / s                                                 # lane-dense store


def pack_params(w1, b1, w2, b2, w3, b3):
    """Pack (in,out) f32 weights + (out,) f32 biases into two kernel buffers.

    Returns:
      w_packed: (2*128 + round_up(F, 16), 128) bfloat16
      b_packed: (8, 128) float32  (row 2 carries the -1e30 class-lane mask)
    """
    f, h1 = w1.shape           # (F, 20)
    _, h2 = w2.shape           # (20, 10)
    _, c = w3.shape            # (10, num_classes)

    f_pad = _round_up(f, _SUBPACK)
    rows = 2 * _LANE + f_pad
    wp = jnp.zeros((rows, _LANE), jnp.float32)
    wp = wp.at[0:h1, 0:h2].set(w2)                        # W2  rows [0, 128)
    wp = wp.at[_LANE:_LANE + h2, 0:c].set(w3)             # W3  rows [128, 256)
    wp = wp.at[2 * _LANE:2 * _LANE + f, 0:h1].set(w1)     # W1  rows [256, 256+F)
    wp = wp.astype(jnp.bfloat16)

    bp = jnp.zeros((8, _LANE), jnp.float32)
    bp = bp.at[0, 0:h1].set(b1)
    bp = bp.at[1, 0:h2].set(b2)
    bp = bp.at[2, :].set(-1e30)                           # mask padded class lanes
    bp = bp.at[2, 0:c].set(b3)
    return wp, bp


def pad_features(x):
    """One-time data-prep: zero-pad the feature axis to a multiple of 16."""
    b, f = x.shape
    f_pad = _round_up(f, _SUBPACK)
    if f_pad == f:
        return x
    return jnp.pad(x, ((0, 0), (0, f_pad - f)))


def _choose_batch_tile(batch, max_block_rows):
    """Sublane-aligned batch tile; >= 2 grid steps when possible (v7x megacore),
    capped so double-buffered x/out tiles stay far below the scoped VMEM limit."""
    half = pl.cdiv(batch, 2)
    tb = min(max_block_rows, _round_up(half, 8))
    return max(8, tb)


@functools.partial(jax.jit,
                   static_argnames=("num_classes", "max_block_rows", "slice_output"))
def keypoint_classifier_forward(x, w_packed, b_packed, num_classes,
                                max_block_rows=2048, slice_output=True):
    """x: (B, F_padded) float32 -> (B, num_classes) softmax probabilities
    (or the padded (B, 128) slab if slice_output=False; pad lanes are exactly 0)."""
    B, F = x.shape
    tb = _choose_batch_tile(B, max_block_rows)
    grid = (pl.cdiv(B, tb),)

    out_padded = pl.pallas_call(
        _mlp_softmax_kernel,
        out_shape=jax.ShapeDtypeStruct((B, _LANE), jnp.float32),
        grid_spec=pltpu.PrefetchScalarGridSpec(
            num_scalar_prefetch=0,
            grid=grid,
            in_specs=[
                pl.BlockSpec((tb, F), lambda i: (i, 0)),            # x: batch-tiled
                pl.BlockSpec(w_packed.shape, lambda i: (0, 0)),     # weights: resident
                pl.BlockSpec(b_packed.shape, lambda i: (0, 0)),     # biases: resident
            ],
            out_specs=pl.BlockSpec((tb, _LANE), lambda i: (i, 0)),  # lane-dense output
        ),
        compiler_params=pltpu.CompilerParams(
            dimension_semantics=("parallel",)),
    )(x, w_packed, b_packed)

    if slice_output:
        return out_padded[:, :num_classes]
    return out_padded


def init_params(key, input_size, num_classes):
    """PyTorch-style uniform(-1/sqrt(fan_in), 1/sqrt(fan_in)) init.

    Weights stored transposed: (in_features, out_features); biases 1-D."""
    dims = [(input_size, 20), (20, 10), (10, num_classes)]
    params = {}
    for i, (fan_in, fan_out) in enumerate(dims, start=1):
        key, kw, kb = jax.random.split(key, 3)
        bound = 1.0 / (fan_in ** 0.5)
        params[f"w{i}"] = jax.random.uniform(
            kw, (fan_in, fan_out), jnp.float32, -bound, bound)
        params[f"b{i}"] = jax.random.uniform(
            kb, (fan_out,), jnp.float32, -bound, bound)
    return params


def reference_forward(x, params):
    """Pure-JAX f32 reference of the PyTorch module (eval mode)."""
    h1 = jnp.maximum(x @ params["w1"] + params["b1"], 0.0)
    h2 = jnp.maximum(h1 @ params["w2"] + params["b2"], 0.0)
    logits = h2 @ params["w3"] + params["b3"]
    return jax.nn.softmax(logits, axis=1)


if __name__ == "__main__":
    key = jax.random.PRNGKey(0)
    k_x, k_p = jax.random.split(key)

    batch = 256          # many keypoint frames per call (amortizes launch cost)
    input_size = 42      # 21 hand keypoints * (x, y)
    num_classes = 4

    x = jax.random.normal(k_x, (batch, input_size), jnp.float32)
    params = init_params(k_p, input_size, num_classes)

    # One-time data-prep (outside the hot path): pack weights, pad features to 48.
    w_packed, b_packed = pack_params(params["w1"], params["b1"],
                                     params["w2"], params["b2"],
                                     params["w3"], params["b3"])
    x_padded = pad_features(x)

    out = keypoint_classifier_forward(x_padded, w_packed, b_packed, num_classes)
    out = jax.block_until_ready(out)

    # sanity checks
    assert out.shape == (batch, num_classes)
    row_sums = jnp.sum(out, axis=1)
    assert bool(jnp.all(jnp.abs(row_sums - 1.0) < 1e-4))   # exact-divide softmax
    assert bool(jnp.all(out >= 0.0))
    ref = reference_forward(x, params)                      # f32 reference
    assert bool(jnp.all(jnp.abs(out - ref) < 2e-2))         # bf16-MXU tolerance
    print("KERNEL_OK")
</pallas_src>

<mosaic_0001>
module attributes {stable_mosaic.version = 11 : i64} {
  func.func @_mlp_softmax_kernel(%arg0: i32, %arg1: memref<128x48xf32, #tpu.memory_space<vmem>>, %arg2: memref<304x128xbf16, #tpu.memory_space<vmem>>, %arg3: memref<8x128xf32, #tpu.memory_space<vmem>>, %arg4: memref<128x128xf32, #tpu.memory_space<vmem>>) attributes {dimension_semantics = [#tpu.dimension_semantics<parallel>], iteration_bounds = array<i64: 2>, scalar_prefetch = 0 : i64, scratch_operands = 0 : i64, tpu.core_type = #tpu.core_type<tc>, window_params = [{transform_indices = @transform_0, window_bounds = array<i64: 128, 48>}, {pipeline_mode = #tpu.pipeline_mode<synchronous>, transform_indices = @transform_1, window_bounds = array<i64: 304, 128>}, {pipeline_mode = #tpu.pipeline_mode<synchronous>, transform_indices = @transform_2, window_bounds = array<i64: 8, 128>}, {transform_indices = @transform_3, window_bounds = array<i64: 128, 128>}]} {
    %c0 = arith.constant 0 : index
    %c0_0 = arith.constant 0 : index
    %0 = vector.load %arg2[%c0, %c0_0] : memref<304x128xbf16, #tpu.memory_space<vmem>>, vector<128x128xbf16>
    %c128 = arith.constant 128 : index
    %c0_1 = arith.constant 0 : index
    %1 = vector.load %arg2[%c128, %c0_1] : memref<304x128xbf16, #tpu.memory_space<vmem>>, vector<128x128xbf16>
    %c256 = arith.constant 256 : index
    %c0_2 = arith.constant 0 : index
    %2 = vector.load %arg2[%c256, %c0_2] : memref<304x128xbf16, #tpu.memory_space<vmem>>, vector<48x128xbf16>
    %c0_3 = arith.constant 0 : index
    %c0_4 = arith.constant 0 : index
    %3 = vector.load %arg3[%c0_3, %c0_4] : memref<8x128xf32, #tpu.memory_space<vmem>>, vector<8x128xf32>
    %4 = vector.extract_strided_slice %3 {offsets = [0, 0], sizes = [1, 128], strides = [1, 1]} : vector<8x128xf32> to vector<1x128xf32>
    %5 = vector.extract_strided_slice %3 {offsets = [1, 0], sizes = [1, 128], strides = [1, 1]} : vector<8x128xf32> to vector<1x128xf32>
    %6 = vector.extract_strided_slice %3 {offsets = [2, 0], sizes = [1, 128], strides = [1, 1]} : vector<8x128xf32> to vector<1x128xf32>
    %c0_5 = arith.constant 0 : index
    %c0_6 = arith.constant 0 : index
    %7 = vector.load %arg1[%c0_5, %c0_6] : memref<128x48xf32, #tpu.memory_space<vmem>>, vector<128x48xf32>
    %8 = arith.truncf %7 : vector<128x48xf32> to vector<128x48xbf16>
    %cst = arith.constant dense<0.000000e+00> : vector<128x128xf32>
    %9 = tpu.matmul %8, %2, %cst {dimension_numbers = #tpu.dot_dimension_numbers<[1], [0], [0], [1], [0, 0, 1, 1], [], []>} : vector<128x48xbf16>, vector<48x128xbf16>, vector<128x128xf32> -> vector<128x128xf32>
    %10 = vector.broadcast %4 : vector<1x128xf32> to vector<128x128xf32>
    %11 = arith.addf %9, %10 : vector<128x128xf32>
    %cst_7 = arith.constant 0.000000e+00 : f32
    %12 = vector.broadcast %cst_7 : f32 to vector<128x128xf32>
    %13 = arith.maximumf %11, %12 : vector<128x128xf32>
    %14 = arith.truncf %13 : vector<128x128xf32> to vector<128x128xbf16>
    %cst_8 = arith.constant dense<0.000000e+00> : vector<128x128xf32>
    %15 = tpu.matmul %14, %0, %cst_8 {dimension_numbers = #tpu.dot_dimension_numbers<[1], [0], [0], [1], [0, 0, 1, 1], [], []>} : vector<128x128xbf16>, vector<128x128xbf16>, vector<128x128xf32> -> vector<128x128xf32>
    %16 = vector.broadcast %5 : vector<1x128xf32> to vector<128x128xf32>
    %17 = arith.addf %15, %16 : vector<128x128xf32>
    %cst_9 = arith.constant 0.000000e+00 : f32
    %18 = vector.broadcast %cst_9 : f32 to vector<128x128xf32>
    %19 = arith.maximumf %17, %18 : vector<128x128xf32>
    %20 = arith.truncf %19 : vector<128x128xf32> to vector<128x128xbf16>
    %cst_10 = arith.constant dense<0.000000e+00> : vector<128x128xf32>
    %21 = tpu.matmul %20, %1, %cst_10 {dimension_numbers = #tpu.dot_dimension_numbers<[1], [0], [0], [1], [0, 0, 1, 1], [], []>} : vector<128x128xbf16>, vector<128x128xbf16>, vector<128x128xf32> -> vector<128x128xf32>
    %22 = vector.broadcast %6 : vector<1x128xf32> to vector<128x128xf32>
    %23 = arith.addf %21, %22 : vector<128x128xf32>
    %cst_11 = arith.constant dense<0xFF800000> : vector<128xf32>
    %24 = vector.multi_reduction <maximumf>, %23, %cst_11 [1] : vector<128x128xf32> to vector<128xf32>
    %25 = vector.shape_cast %24 : vector<128xf32> to vector<128x1xf32>
    %26 = vector.broadcast %25 : vector<128x1xf32> to vector<128x128xf32>
    %27 = arith.subf %23, %26 : vector<128x128xf32>
    %28 = math.exp %27 : vector<128x128xf32>
    %cst_12 = arith.constant dense<0.000000e+00> : vector<128xf32>
    %29 = vector.multi_reduction <add>, %28, %cst_12 [1] : vector<128x128xf32> to vector<128xf32>
    %30 = vector.shape_cast %29 : vector<128xf32> to vector<128x1xf32>
    %31 = vector.broadcast %30 : vector<128x1xf32> to vector<128x128xf32>
    %32 = arith.divf %28, %31 : vector<128x128xf32>
    %c0_13 = arith.constant 0 : index
    %c0_14 = arith.constant 0 : index
    %33 = vector.load %arg4[%c0_13, %c0_14] : memref<128x128xf32, #tpu.memory_space<vmem>>, vector<128x128xf32>
    tpu.vector_store %arg4[%c0_13, %c0_14], %32 {strides = array<i32>} : memref<128x128xf32, #tpu.memory_space<vmem>>, vector<128x128xf32>,
    return
  }
  func.func @transform_0(%arg0: i32) -> (i32, i32) {
    %c0_i32 = arith.constant 0 : i32
    %c0_i32_0 = arith.constant 0 : i32
    return %arg0, %c0_i32 : i32, i32
  }
  func.func @transform_1(%arg0: i32) -> (i32, i32) {
    %c0_i32 = arith.constant 0 : i32
    %c0_i32_0 = arith.constant 0 : i32
    %c0_i32_1 = arith.constant 0 : i32
    return %c0_i32, %c0_i32_0 : i32, i32
  }
  func.func @transform_2(%arg0: i32) -> (i32, i32) {
    %c0_i32 = arith.constant 0 : i32
    %c0_i32_0 = arith.constant 0 : i32
    %c0_i32_1 = arith.constant 0 : i32
    return %c0_i32, %c0_i32_0 : i32, i32
  }
  func.func @transform_3(%arg0: i32) -> (i32, i32) {
    %c0_i32 = arith.constant 0 : i32
    %c0_i32_0 = arith.constant 0 : i32
    return %arg0, %c0_i32 : i32, i32
  }
}

</mosaic_0001>

<llo_original>
// kernel: keypoint_classifier_forward.1
$region0: #{keypoint_classifier_forward.1}
  #allocation0 [shape = 'u32[]', space=smem, size = 0x4, offset = 0x4, fixed_abs, tag = 'smem constant byte address 0x4 - core index']
  #allocation1 [shape = 'u32[144,128]{1,0:T(1,128)}', space=vmem, size = 0x12000, scoped, tag = 'internal scratch']
  %s0 = inlined_call_operand.vmem [shape: f32[256,48], index: 0, kind: input, shape index: {}]
  %s1 = inlined_call_operand.vmem [shape: bf16[304,128], index: 1, kind: input, shape index: {}]
  %s2 = inlined_call_operand.vmem [shape: f32[8,128], index: 2, kind: input, shape index: {}]
  %s3 = inlined_call_operand.vmem [shape: f32[256,128], index: 3, kind: output, shape index: {}]
  %s4 = sld [smem:[#allocation0]]
  $region45: #{keypoint_classifier_forward.1} parent=0
    _
  %s6 = ssub.s32 1, %s4
  %s7 = scalar_select 0, %s6, %s4
  loop: start=0, step=1, limit=4
  $region2: #{keypoint_classifier_forward.1} parent=0 // loop_pre_header
    _
  $region3: #{keypoint_classifier_forward.1} parent=0 // loop_header
    %s9 = sphi 0, %s13
    %p10 = scmp.ge.s32.totalorder %s9, 4
    %s19 = sphi 0, %s21
    %s22 = sphi 0, %s19
    %s23 = sphi 0, %s22
    %s39 = sphi 0, %s23
    %s43 = sphi 0, %s43
    %s45 = sphi 0, %s43
    %s46 = sphi 0, %s45
    %s60 = sphi 0, %s46
    %s64 = sphi 0, %s64
    %s66 = sphi 0, %s64
    %s67 = sphi 0, %s66
    %s81 = sphi 0, %s67
    %s87 = sphi 0, %s89
    %s90 = sphi 0, %s87
    %s91 = sphi 0, %s90
    %s107 = sphi 0, %s91
  $region4: #{keypoint_classifier_forward.1} parent=0 // loop_header_branch
    %12 = sbr.rel (%p10) target = $region8
  $region5: #{keypoint_classifier_forward.1} parent=0 // loop_body
    %s14 = ssub.s32 %s9, 1
    %s15 = ssub.s32 %s9, 2
    %s16 = sadd.s32 %s9, 1
    %s17 = ssub.s32 %s9, %s16
    %p18 = scmp.eq.s32.totalorder %s17, 0
    %s20 = sadd.s32 %s19, 1
    %s21 = scalar_select %p18, %s19, %s20
    %p24 = pneg %p18
    %p25 = scmp.eq.s32.totalorder %s9, 1
    %p26 = por %p24, %p25
    %p27 = scmp.ne.s32.totalorder %s19, %s22
    %p28 = scmp.eq.s32.totalorder %s9, 0
    %p29 = por %p27, %p28
    %p30 = scmp.ne.s32.totalorder %s19, %s22
    %p31 = scmp.eq.s32.totalorder %s14, 1
    %p32 = por %p30, %p31
    %p33 = scmp.ne.s32.totalorder %s22, %s23
    %p34 = scmp.eq.s32.totalorder %s14, 0
    %p35 = por %p33, %p34
    %p36 = scmp.ne.s32.totalorder %s22, %s23
    %p37 = scmp.eq.s32.totalorder %s15, 1
    %p38 = por %p36, %p37
    %p40 = scmp.ne.s32.totalorder %s23, %s39
    %p41 = scmp.eq.s32.totalorder %s15, 0
    %p42 = por %p40, %p41
    %s44 = sadd.s32 %s43, 1
    %p47 = scmp.eq.s32.totalorder %s9, 1
    %p48 = scmp.ne.s32.totalorder %s43, %s45
    %p49 = scmp.eq.s32.totalorder %s9, 0
    %p50 = por %p48, %p49
    %p51 = scmp.ne.s32.totalorder %s43, %s45
    %p52 = scmp.eq.s32.totalorder %s14, 1
    %p53 = por %p51, %p52
    %p54 = scmp.ne.s32.totalorder %s45, %s46
    %p55 = scmp.eq.s32.totalorder %s14, 0
    %p56 = por %p54, %p55
    %p57 = scmp.ne.s32.totalorder %s45, %s46
    %p58 = scmp.eq.s32.totalorder %s15, 1
    %p59 = por %p57, %p58
    %p61 = scmp.ne.s32.totalorder %s46, %s60
    %p62 = scmp.eq.s32.totalorder %s15, 0
    %p63 = por %p61, %p62
    %s65 = sadd.s32 %s64, 1
    %p68 = scmp.eq.s32.totalorder %s9, 1
    %p69 = scmp.ne.s32.totalorder %s64, %s66
    %p70 = scmp.eq.s32.totalorder %s9, 0
    %p71 = por %p69, %p70
    %p72 = scmp.ne.s32.totalorder %s64, %s66
    %p73 = scmp.eq.s32.totalorder %s14, 1
    %p74 = por %p72, %p73
    %p75 = scmp.ne.s32.totalorder %s66, %s67
    %p76 = scmp.eq.s32.totalorder %s14, 0
    %p77 = por %p75, %p76
    %p78 = scmp.ne.s32.totalorder %s66, %s67
    %p79 = scmp.eq.s32.totalorder %s15, 1
    %p80 = por %p78, %p79
    %p82 = scmp.ne.s32.totalorder %s67, %s81
    %p83 = scmp.eq.s32.totalorder %s15, 0
    %p84 = por %p82, %p83
    %s85 = ssub.s32 %s9, %s16
    %p86 = scmp.eq.s32.totalorder %s85, 0
    %s88 = sadd.s32 %s87, 1
    %s89 = scalar_select %p86, %s87, %s88
    %p92 = pneg %p86
    %p93 = scmp.eq.s32.totalorder %s9, 1
    %p94 = por %p92, %p93
    %p95 = scmp.ne.s32.totalorder %s87, %s90
    %p96 = scmp.eq.s32.totalorder %s9, 0
    %p97 = por %p95, %p96
    %p98 = scmp.ne.s32.totalorder %s87, %s90
    %p99 = scmp.eq.s32.totalorder %s14, 1
    %p100 = por %p98, %p99
    %p101 = scmp.ne.s32.totalorder %s90, %s91
    %p102 = scmp.eq.s32.totalorder %s14, 0
    %p103 = por %p101, %p102
    %p104 = scmp.ne.s32.totalorder %s90, %s91
    %p105 = scmp.eq.s32.totalorder %s15, 1
    %p106 = por %p104, %p105
    %p108 = scmp.ne.s32.totalorder %s91, %s107
    %p109 = scmp.eq.s32.totalorder %s15, 0
    %p110 = por %p108, %p109
    %p111 = scmp.le.s32.totalorder 1, %s9
    %p112 = scmp.lt.s32.totalorder %s9, 3
    %p113 = pnand %p111, %p112
    %p114 = pneg %p113
    // Predicated region
    $region9: #{keypoint_classifier_forward.1} parent=5 // pred_check
      _
    $region10: #{keypoint_classifier_forward.1} parent=5 // pred_check_branch
      %116 = sbr.rel (%p113) target = $region12
    $region11: #{keypoint_classifier_forward.1} parent=5 // pred_region
      %s117 = ssub.s32 %s9, 1
      // Predicated region
      $region13: #{keypoint_classifier_forward.1} parent=11 // pred_check
        %p118 = pneg %p56
      $region14: #{keypoint_classifier_forward.1} parent=11 // pred_check_branch
        %120 = sbr.rel (%p118) target = $region16
      $region15: #{keypoint_classifier_forward.1} parent=11 // pred_region
        _
      $region16: #{keypoint_classifier_forward.1} parent=11 // pred_fallthru
        _
      // Predicated region
      $region17: #{keypoint_classifier_forward.1} parent=11 // pred_check
        %p121 = pneg %p77
      $region18: #{keypoint_classifier_forward.1} parent=11 // pred_check_branch
        %123 = sbr.rel (%p121) target = $region20
      $region19: #{keypoint_classifier_forward.1} parent=11 // pred_region
        _
      $region20: #{keypoint_classifier_forward.1} parent=11 // pred_fallthru
        _
    $region12: #{keypoint_classifier_forward.1} parent=5 // pred_fallthru
      _
    %p124 = scmp.lt.s32.totalorder %s9, 2
    // Predicated region
    $region21: #{keypoint_classifier_forward.1} parent=5 // pred_check
      %p125 = pneg %p124
    $region22: #{keypoint_classifier_forward.1} parent=5 // pred_check_branch
      %127 = sbr.rel (%p125) target = $region24
    $region23: #{keypoint_classifier_forward.1} parent=5 // pred_region
      // Predicated region
      $region25: #{keypoint_classifier_forward.1} parent=23 // pred_check
        %p128 = pneg %p29
      $region26: #{keypoint_classifier_forward.1} parent=23 // pred_check_branch
        %130 = sbr.rel (%p128) target = $region28
      $region27: #{keypoint_classifier_forward.1} parent=23 // pred_region
        %s131 = smul.u32 16, %s9
        %p132 = scmp.lt.s32.totalorder %s131, 31
        %s133 = scalar_select %p132, %s131, 31
        %s134 = smul.addr %s133, 8
        %s135 = scalar_lea.vmem %s0, %s134
        %s136 = smul.u32 16, %s9
      $region28: #{keypoint_classifier_forward.1} parent=23 // pred_fallthru
        _
    $region24: #{keypoint_classifier_forward.1} parent=5 // pred_fallthru
      _
    %p137 = scmp.le.s32.totalorder 1, %s9
    %p138 = scmp.lt.s32.totalorder %s9, 3
    %p139 = pnand %p137, %p138
    %p140 = pneg %p139
    // Predicated region
    $region29: #{keypoint_classifier_forward.1} parent=5 // pred_check
      _
    $region30: #{keypoint_classifier_forward.1} parent=5 // pred_check_branch
      %142 = sbr.rel (%p139) target = $region32
    $region31: #{keypoint_classifier_forward.1} parent=5 // pred_region
      %s143 = ssub.s32 %s9, 1
      %s144 = smul.u32 16, %s14
      %p145 = scmp.lt.s32.totalorder %s144, 31
      %s146 = scalar_select %p145, %s144, 31
      %s147 = smul.addr %s146, 8
      %s148 = scalar_lea.vmem %s0, %s147
      %p149 = pneg %p35
      %p150 = pneg %p32
      %p151 = pneg %p56
      %p152 = pneg %p53
      %p153 = pneg %p77
      %p154 = pneg %p74
      %p155 = pneg %p103
      %p156 = pneg %p100
      %s157 = smul.u32 16, %s14
      %p158 = scmp.lt.s32.totalorder %s157, 31
      %s159 = scalar_select %p158, %s157, 31
      %s160 = smul.addr %s159, 8
      %s161 = scalar_lea.vmem %s3, %s160
      %s162 = smul.u32 16, %s14
      %p163 = scmp.lt.s32.totalorder %s162, 31
      %s164 = scalar_select %p163, %s162, 31
      %s165 = smul.addr %s164, 8
      %s166 = scalar_lea.vmem %s0, %s165
      %s167 = smul.u32 16, %s14
      %s168 = smul.u32 16, %s14
      %p169 = scmp.lt.s32.totalorder %s168, 31
      %s170 = scalar_select %p169, %s168, 31
      %s171 = smul.addr %s170, 8
      %s172 = scalar_lea.vmem %s3, %s171
      %s173 = smul.u32 16, %s14
      %v175 = vld [vmem:[%s1] sm:$0xf]
      %v176 = vld [vmem:[%s1 + $0x4] sm:$0xf]
      %v177 = vld [vmem:[%s1 + $0x8] sm:$0xf]
      %v178 = vld [vmem:[%s1 + $0xc] sm:$0xf]
      %v179 = vld [vmem:[%s1 + $0x10] sm:$0xf]
      %v180 = vld [vmem:[%s1 + $0x14] sm:$0xf]
      %v181 = vld [vmem:[%s1 + $0x18] sm:$0xf]
      %v182 = vld [vmem:[%s1 + $0x1c] sm:$0xf]
      %v183 = vld [vmem:[%s1 + $0x20] sm:$0xf]
      %v184 = vld [vmem:[%s1 + $0x24] sm:$0xf]
      %v185 = vld [vmem:[%s1 + $0x28] sm:$0xf]
      %v186 = vld [vmem:[%s1 + $0x2c] sm:$0xf]
      %v187 = vld [vmem:[%s1 + $0x30] sm:$0xf]
      %v188 = vld [vmem:[%s1 + $0x34] sm:$0xf]
      %v189 = vld [vmem:[%s1 + $0x38] sm:$0xf]
      %v190 = vld [vmem:[%s1 + $0x3c] sm:$0xf]
      %v191 = vld [vmem:[%s1 + $0x40] sm:$0xf]
      %v192 = vld [vmem:[%s1 + $0x44] sm:$0xf]
      %v193 = vld [vmem:[%s1 + $0x48] sm:$0xf]
      %v194 = vld [vmem:[%s1 + $0x4c] sm:$0xf]
      %v195 = vld [vmem:[%s1 + $0x50] sm:$0xf]
      %v196 = vld [vmem:[%s1 + $0x54] sm:$0xf]
      %v197 = vld [vmem:[%s1 + $0x58] sm:$0xf]
      %v198 = vld [vmem:[%s1 + $0x5c] sm:$0xf]
      %v199 = vld [vmem:[%s1 + $0x60] sm:$0xf]
      %v200 = vld [vmem:[%s1 + $0x64] sm:$0xf]
      %v201 = vld [vmem:[%s1 + $0x68] sm:$0xf]
      %v202 = vld [vmem:[%s1 + $0x6c] sm:$0xf]
      %v203 = vld [vmem:[%s1 + $0x70] sm:$0xf]
      %v204 = vld [vmem:[%s1 + $0x74] sm:$0xf]
      %v205 = vld [vmem:[%s1 + $0x78] sm:$0xf]
      %v206 = vld [vmem:[%s1 + $0x7c] sm:$0xf]
      %v207 = vld [vmem:[%s1 + $0x80] sm:$0xf]
      %v208 = vld [vmem:[%s1 + $0x84] sm:$0xf]
      %v209 = vld [vmem:[%s1 + $0x88] sm:$0xf]
      %v210 = vld [vmem:[%s1 + $0x8c] sm:$0xf]
      %v211 = vld [vmem:[%s1 + $0x90] sm:$0xf]
      %v212 = vld [vmem:[%s1 + $0x94] sm:$0xf]
      %v213 = vld [vmem:[%s2] sm:$0xff]
      %v214 = vld [vmem:[%s166] sm:$0xff]
      %v215 = vld [vmem:[%s166 + $0x8] sm:$0xff]
      %v216 = vld [vmem:[%s166 + $0x10] sm:$0xff]
      %v217 = vld [vmem:[%s166 + $0x18] sm:$0xff]
      %v218 = vld [vmem:[%s166 + $0x20] sm:$0xff]
      %v219 = vld [vmem:[%s166 + $0x28] sm:$0xff]
      %v220 = vld [vmem:[%s166 + $0x30] sm:$0xff]
      %v221 = vld [vmem:[%s166 + $0x38] sm:$0xff]
      %v222 = vld [vmem:[%s166 + $0x40] sm:$0xff]
      %v223 = vld [vmem:[%s166 + $0x48] sm:$0xff]
      %v224 = vld [vmem:[%s166 + $0x50] sm:$0xff]
      %v225 = vld [vmem:[%s166 + $0x58] sm:$0xff]
      %v226 = vld [vmem:[%s166 + $0x60] sm:$0xff]
      %v227 = vld [vmem:[%s166 + $0x68] sm:$0xff]
      %v228 = vld [vmem:[%s166 + $0x70] sm:$0xff]
      %v229 = vld [vmem:[%s166 + $0x78] sm:$0xff]
      %v230 = vpack.c.bf16 %v215, %v214
      %v231 = vpack.c.bf16 %v217, %v216
      %v232 = vpack.c.bf16 %v219, %v218
      %v233 = vpack.c.bf16 %v221, %v220
      %v234 = vpack.c.bf16 %v223, %v222
      %v235 = vpack.c.bf16 %v225, %v224
      %v236 = vpack.c.bf16 %v227, %v226
      %v237 = vpack.c.bf16 %v229, %v228
      %v238 = vlaneseq
      %v239 = vshrl.u32 %v238, 7
      %v240 = vsub.s32 0, %v239
      %v241 = vrot.slane %v213, %v240
      %v248 = vunpack.c.l.b16 %v207
      %v249 = vunpack.c.l.b16 %v208
      %v250 = vunpack.c.l.b16 %v209
      %v251 = vunpack.c.l.b16 %v210
      %v252 = vunpack.c.l.b16 %v211
      %v253 = vunpack.c.l.b16 %v212
      %v254 = vpack.c.b16 %v249, %v248
      %v255 = vpack.c.b16 %v251, %v250
      %v256 = vpack.c.b16 %v253, %v252
      %vm260 = vcmask 392192
      %v262 = vsel %vm260, %v230, 0
      %v265 = vsel %vm260, %v231, 0
      %v268 = vsel %vm260, %v232, 0
      %v271 = vsel %vm260, %v233, 0
      %v274 = vsel %vm260, %v234, 0
      %v277 = vsel %vm260, %v235, 0
      %v280 = vsel %vm260, %v236, 0
      %v283 = vsel %vm260, %v237, 0
      %285 = vmatprep.subr.bf16.mxu0 0
      %286 = vmatpush1.bf16.msra.mxu0 0
      %287 = vmatprep.subr.bf16.mxu0 0
      %288 = vmatpush1.bf16.msra.mxu0 0
      %289 = vmatprep.subr.bf16.mxu0 0
      %290 = vmatpush1.bf16.msra.mxu0 0
      %291 = vmatprep.subr.bf16.mxu0 0
      %292 = vmatpush1.bf16.msra.mxu0 0
      %293 = vmatprep.subr.bf16.mxu0 0
      %294 = vmatpush1.bf16.msra.mxu0 0
      %295 = vmatprep.subr.bf16.mxu0 0
      %296 = vmatpush1.bf16.msra.mxu0 %v256
      %297 = vmatprep.subr.bf16.mxu0 0
      %298 = vmatpush1.bf16.msra.mxu0 %v255
      %299 = vmatprep.subr.bf16.mxu0 0
      %300 = vmatpush1.bf16.msra.mxu0 %v254
      %301 = vmatprep.subr.bf16.mxu0 0
      %302 = vmatpush2.bf16.msra.mxu0 0
      %303 = vmatprep.subr.bf16.mxu0 0
      %304 = vmatpush2.bf16.msra.mxu0 0
      %305 = vmatprep.subr.bf16.mxu0 0
      %306 = vmatpush2.bf16.msra.mxu0 0
      %307 = vmatprep.subr.bf16.mxu0 0
      %308 = vmatpush2.bf16.msra.mxu0 0
      %309 = vmatprep.subr.bf16.mxu0 0
      %310 = vmatpush2.bf16.msra.mxu0 0
      %311 = vmatprep.subr.bf16.mxu0 0
      %312 = vmatpush2.bf16.msra.mxu0 0
      %313 = vmatprep.subr.bf16.mxu0 0
      %314 = vmatpush2.bf16.msra.mxu0 0
      %315 = vmatprep.subr.bf16.mxu0 0
      %316 = vmatpush2.bf16.msra.mxu0 0
      %317 = vmatprep.mubr.bf16.mxu0 0
      %318 = vmatmul.mubr.bf16.gmra.mxu0 %v262
      %v319 = vpop.f32.mrf.mxu0
      %v320 = vadd.f32 %v241, %v319
      %v321 = vpop.f32.mrf.mxu0
      %v322 = vpop.f32.mrf.mxu0
      %v323 = vadd.f32 %v241, %v322
      %v324 = vpop.f32.mrf.mxu0
      %325 = vmatprep.mubr.bf16.mxu0 0
      %326 = vmatmul.mubr.bf16.gmra.mxu0 %v265
      %v327 = vpop.f32.mrf.mxu0
      %v328 = vadd.f32 %v241, %v327
      %v329 = vpop.f32.mrf.mxu0
      %v330 = vpop.f32.mrf.mxu0
      %v331 = vadd.f32 %v241, %v330
      %v332 = vpop.f32.mrf.mxu0
      %333 = vmatprep.mubr.bf16.mxu0 0
      %334 = vmatmul.mubr.bf16.gmra.mxu0 %v268
      %v335 = vpop.f32.mrf.mxu0
      %v336 = vadd.f32 %v241, %v335
      %v337 = vpop.f32.mrf.mxu0
      %v338 = vpop.f32.mrf.mxu0
      %v339 = vadd.f32 %v241, %v338
      %v340 = vpop.f32.mrf.mxu0
      %341 = vmatprep.mubr.bf16.mxu0 0
      %342 = vmatmul.mubr.bf16.gmra.mxu0 %v271
      %v343 = vpop.f32.mrf.mxu0
      %v344 = vadd.f32 %v241, %v343
      %v345 = vpop.f32.mrf.mxu0
      %v346 = vpop.f32.mrf.mxu0
      %v347 = vadd.f32 %v241, %v346
      %v348 = vpop.f32.mrf.mxu0
      %349 = vmatprep.mubr.bf16.mxu0 0
      %350 = vmatmul.mubr.bf16.gmra.mxu0 %v274
      %v351 = vpop.f32.mrf.mxu0
      %v352 = vadd.f32 %v241, %v351
      %v353 = vpop.f32.mrf.mxu0
      %v354 = vpop.f32.mrf.mxu0
      %v355 = vadd.f32 %v241, %v354
      %v356 = vpop.f32.mrf.mxu0
      %357 = vmatprep.mubr.bf16.mxu0 0
      %358 = vmatmul.mubr.bf16.gmra.mxu0 %v277
      %v359 = vpop.f32.mrf.mxu0
      %v360 = vadd.f32 %v241, %v359
      %v361 = vpop.f32.mrf.mxu0
      %v362 = vpop.f32.mrf.mxu0
      %v363 = vadd.f32 %v241, %v362
      %v364 = vpop.f32.mrf.mxu0
      %365 = vmatprep.mubr.bf16.mxu0 0
      %366 = vmatmul.mubr.bf16.gmra.mxu0 %v280
      %v367 = vpop.f32.mrf.mxu0
      %v368 = vadd.f32 %v241, %v367
      %v369 = vpop.f32.mrf.mxu0
      %v370 = vpop.f32.mrf.mxu0
      %v371 = vadd.f32 %v241, %v370
      %v372 = vpop.f32.mrf.mxu0
      %373 = vmatprep.mubr.bf16.mxu0 0
      %374 = vmatmul.mubr.bf16.gmra.mxu0 %v283
      %v375 = vpop.f32.mrf.mxu0
      %v376 = vadd.f32 %v241, %v375
      %v377 = vpop.f32.mrf.mxu0
      %v378 = vpop.f32.mrf.mxu0
      %v379 = vadd.f32 %v241, %v378
      %v380 = vpop.f32.mrf.mxu0
      %381 = vdwg.mxu0
      %v382 = vmax.f32 %v320, 0.0
      %v383 = vmax.f32 %v323, 0.0
      %v384 = vmax.f32 %v328, 0.0
      %v385 = vmax.f32 %v331, 0.0
      %v386 = vmax.f32 %v336, 0.0
      %v387 = vmax.f32 %v339, 0.0
      %v388 = vmax.f32 %v344, 0.0
      %v389 = vmax.f32 %v347, 0.0
      %v390 = vmax.f32 %v352, 0.0
      %v391 = vmax.f32 %v355, 0.0
      %v392 = vmax.f32 %v360, 0.0
      %v393 = vmax.f32 %v363, 0.0
      %v394 = vmax.f32 %v368, 0.0
      %v395 = vmax.f32 %v371, 0.0
      %v396 = vmax.f32 %v376, 0.0
      %v397 = vmax.f32 %v379, 0.0
      %v398 = vpack.c.bf16 %v383, %v382
      %v399 = vpack.c.bf16 %v385, %v384
      %v400 = vpack.c.bf16 %v387, %v386
      %v401 = vpack.c.bf16 %v389, %v388
      %v402 = vpack.c.bf16 %v391, %v390
      %v403 = vpack.c.bf16 %v393, %v392
      %v404 = vpack.c.bf16 %v395, %v394
      %v405 = vpack.c.bf16 %v397, %v396
      %v406 = vlaneseq
      %v407 = vshrl.u32 %v406, 7
      %v408 = vsub.s32 1, %v407
      %v409 = vrot.slane %v213, %v408
      %v426 = vunpack.c.l.b16 %v175
      %v427 = vunpack.c.l.b16 %v176
      %v428 = vunpack.c.l.b16 %v177
      %v429 = vunpack.c.l.b16 %v178
      %v430 = vunpack.c.l.b16 %v179
      %v431 = vunpack.c.l.b16 %v180
      %v432 = vunpack.c.l.b16 %v181
      %v433 = vunpack.c.l.b16 %v182
      %v434 = vunpack.c.l.b16 %v183
      %v435 = vunpack.c.l.b16 %v184
      %v436 = vunpack.c.l.b16 %v185
      %v437 = vunpack.c.l.b16 %v186
      %v438 = vunpack.c.l.b16 %v187
      %v439 = vunpack.c.l.b16 %v188
      %v440 = vunpack.c.l.b16 %v189
      %v441 = vunpack.c.l.b16 %v190
      %v442 = vpack.c.b16 %v427, %v426
      %v443 = vpack.c.b16 %v429, %v428
      %v444 = vpack.c.b16 %v431, %v430
      %v445 = vpack.c.b16 %v433, %v432
      %v446 = vpack.c.b16 %v435, %v434
      %v447 = vpack.c.b16 %v437, %v436
      %v448 = vpack.c.b16 %v439, %v438
      %v449 = vpack.c.b16 %v441, %v440
      %458 = vmatprep.subr.bf16.mxu0 0
      %459 = vmatpush1.bf16.msra.mxu0 %v449
      %460 = vmatprep.subr.bf16.mxu0 0
      %461 = vmatpush1.bf16.msra.mxu0 %v448
      %462 = vmatprep.subr.bf16.mxu0 0
      %463 = vmatpush1.bf16.msra.mxu0 %v447
      %464 = vmatprep.subr.bf16.mxu0 0
      %465 = vmatpush1.bf16.msra.mxu0 %v446
      %466 = vmatprep.subr.bf16.mxu0 0
      %467 = vmatpush1.bf16.msra.mxu0 %v445
      %468 = vmatprep.subr.bf16.mxu0 0
      %469 = vmatpush1.bf16.msra.mxu0 %v444
      %470 = vmatprep.subr.bf16.mxu0 0
      %471 = vmatpush1.bf16.msra.mxu0 %v443
      %472 = vmatprep.subr.bf16.mxu0 0
      %473 = vmatpush1.bf16.msra.mxu0 %v442
      %474 = vmatprep.subr.bf16.mxu0 0
      %475 = vmatpush2.bf16.msra.mxu0 0
      %476 = vmatprep.subr.bf16.mxu0 0
      %477 = vmatpush2.bf16.msra.mxu0 0
      %478 = vmatprep.subr.bf16.mxu0 0
      %479 = vmatpush2.bf16.msra.mxu0 0
      %480 = vmatprep.subr.bf16.mxu0 0
      %481 = vmatpush2.bf16.msra.mxu0 0
      %482 = vmatprep.subr.bf16.mxu0 0
      %483 = vmatpush2.bf16.msra.mxu0 0
      %484 = vmatprep.subr.bf16.mxu0 0
      %485 = vmatpush2.bf16.msra.mxu0 0
      %486 = vmatprep.subr.bf16.mxu0 0
      %487 = vmatpush2.bf16.msra.mxu0 0
      %488 = vmatprep.subr.bf16.mxu0 0
      %489 = vmatpush2.bf16.msra.mxu0 0
      %490 = vmatprep.mubr.bf16.mxu0 0
      %491 = vmatmul.mubr.bf16.gmra.mxu0 %v398
      %v492 = vpop.f32.mrf.mxu0
      %v493 = vadd.f32 %v409, %v492
      %v494 = vpop.f32.mrf.mxu0
      %v495 = vpop.f32.mrf.mxu0
      %v496 = vadd.f32 %v409, %v495
      %v497 = vpop.f32.mrf.mxu0
      %498 = vmatprep.mubr.bf16.mxu0 0
      %499 = vmatmul.mubr.bf16.gmra.mxu0 %v399
      %v500 = vpop.f32.mrf.mxu0
      %v501 = vadd.f32 %v409, %v500
      %v502 = vpop.f32.mrf.mxu0
      %v503 = vpop.f32.mrf.mxu0
      %v504 = vadd.f32 %v409, %v503
      %v505 = vpop.f32.mrf.mxu0
      %506 = vmatprep.mubr.bf16.mxu0 0
      %507 = vmatmul.mubr.bf16.gmra.mxu0 %v400
      %v508 = vpop.f32.mrf.mxu0
      %v509 = vadd.f32 %v409, %v508
      %v510 = vpop.f32.mrf.mxu0
      %v511 = vpop.f32.mrf.mxu0
      %v512 = vadd.f32 %v409, %v511
      %v513 = vpop.f32.mrf.mxu0
      %514 = vmatprep.mubr.bf16.mxu0 0
      %515 = vmatmul.mubr.bf16.gmra.mxu0 %v401
      %v516 = vpop.f32.mrf.mxu0
      %v517 = vadd.f32 %v409, %v516
      %v518 = vpop.f32.mrf.mxu0
      %v519 = vpop.f32.mrf.mxu0
      %v520 = vadd.f32 %v409, %v519
      %v521 = vpop.f32.mrf.mxu0
      %522 = vmatprep.mubr.bf16.mxu0 0
      %523 = vmatmul.mubr.bf16.gmra.mxu0 %v402
      %v524 = vpop.f32.mrf.mxu0
      %v525 = vadd.f32 %v409, %v524
      %v526 = vpop.f32.mrf.mxu0
      %v527 = vpop.f32.mrf.mxu0
      %v528 = vadd.f32 %v409, %v527
      %v529 = vpop.f32.mrf.mxu0
      %530 = vmatprep.mubr.bf16.mxu0 0
      %531 = vmatmul.mubr.bf16.gmra.mxu0 %v403
      %v532 = vpop.f32.mrf.mxu0
      %v533 = vadd.f32 %v409, %v532
      %v534 = vpop.f32.mrf.mxu0
      %v535 = vpop.f32.mrf.mxu0
      %v536 = vadd.f32 %v409, %v535
      %v537 = vpop.f32.mrf.mxu0
      %538 = vmatprep.mubr.bf16.mxu0 0
      %539 = vmatmul.mubr.bf16.gmra.mxu0 %v404
      %v540 = vpop.f32.mrf.mxu0
      %v541 = vadd.f32 %v409, %v540
      %v542 = vpop.f32.mrf.mxu0
      %v543 = vpop.f32.mrf.mxu0
      %v544 = vadd.f32 %v409, %v543
      %v545 = vpop.f32.mrf.mxu0
      %546 = vmatprep.mubr.bf16.mxu0 0
      %547 = vmatmul.mubr.bf16.gmra.mxu0 %v405
      %v548 = vpop.f32.mrf.mxu0
      %v549 = vadd.f32 %v409, %v548
      %v550 = vpop.f32.mrf.mxu0
      %v551 = vpop.f32.mrf.mxu0
      %v552 = vadd.f32 %v409, %v551
      %v553 = vpop.f32.mrf.mxu0
      %554 = vdwg.mxu0
      %v555 = vmax.f32 %v493, 0.0
      %v556 = vmax.f32 %v496, 0.0
      %v557 = vmax.f32 %v501, 0.0
      %v558 = vmax.f32 %v504, 0.0
      %v559 = vmax.f32 %v509, 0.0
      %v560 = vmax.f32 %v512, 0.0
      %v561 = vmax.f32 %v517, 0.0
      %v562 = vmax.f32 %v520, 0.0
      %v563 = vmax.f32 %v525, 0.0
      %v564 = vmax.f32 %v528, 0.0
      %v565 = vmax.f32 %v533, 0.0
      %v566 = vmax.f32 %v536, 0.0
      %v567 = vmax.f32 %v541, 0.0
      %v568 = vmax.f32 %v544, 0.0
      %v569 = vmax.f32 %v549, 0.0
      %v570 = vmax.f32 %v552, 0.0
      %v571 = vpack.c.bf16 %v556, %v555
      %v572 = vpack.c.bf16 %v558, %v557
      %v573 = vpack.c.bf16 %v560, %v559
      %v574 = vpack.c.bf16 %v562, %v561
      %v575 = vpack.c.bf16 %v564, %v563
      %v576 = vpack.c.bf16 %v566, %v565
      %v577 = vpack.c.bf16 %v568, %v567
      %v578 = vpack.c.bf16 %v570, %v569
      %v579 = vlaneseq
      %v580 = vshrl.u32 %v579, 7
      %v581 = vsub.s32 2, %v580
      %v582 = vrot.slane %v213, %v581
      %v599 = vunpack.c.l.b16 %v191
      %v600 = vunpack.c.l.b16 %v192
      %v601 = vunpack.c.l.b16 %v193
      %v602 = vunpack.c.l.b16 %v194
      %v603 = vunpack.c.l.b16 %v195
      %v604 = vunpack.c.l.b16 %v196
      %v605 = vunpack.c.l.b16 %v197
      %v606 = vunpack.c.l.b16 %v198
      %v607 = vunpack.c.l.b16 %v199
      %v608 = vunpack.c.l.b16 %v200
      %v609 = vunpack.c.l.b16 %v201
      %v610 = vunpack.c.l.b16 %v202
      %v611 = vunpack.c.l.b16 %v203
      %v612 = vunpack.c.l.b16 %v204
      %v613 = vunpack.c.l.b16 %v205
      %v614 = vunpack.c.l.b16 %v206
      %v615 = vpack.c.b16 %v600, %v599
      %v616 = vpack.c.b16 %v602, %v601
      %v617 = vpack.c.b16 %v604, %v603
      %v618 = vpack.c.b16 %v606, %v605
      %v619 = vpack.c.b16 %v608, %v607
      %v620 = vpack.c.b16 %v610, %v609
      %v621 = vpack.c.b16 %v612, %v611
      %v622 = vpack.c.b16 %v614, %v613
      %631 = vmatprep.subr.bf16.mxu0 0
      %632 = vmatpush1.bf16.msra.mxu0 %v622
      %633 = vmatprep.subr.bf16.mxu0 0
      %634 = vmatpush1.bf16.msra.mxu0 %v621
      %635 = vmatprep.subr.bf16.mxu0 0
      %636 = vmatpush1.bf16.msra.mxu0 %v620
      %637 = vmatprep.subr.bf16.mxu0 0
      %638 = vmatpush1.bf16.msra.mxu0 %v619
      %639 = vmatprep.subr.bf16.mxu0 0
      %640 = vmatpush1.bf16.msra.mxu0 %v618
      %641 = vmatprep.subr.bf16.mxu0 0
      %642 = vmatpush1.bf16.msra.mxu0 %v617
      %643 = vmatprep.subr.bf16.mxu0 0
      %644 = vmatpush1.bf16.msra.mxu0 %v616
      %645 = vmatprep.subr.bf16.mxu0 0
      %646 = vmatpush1.bf16.msra.mxu0 %v615
      %647 = vmatprep.subr.bf16.mxu0 0
      %648 = vmatpush2.bf16.msra.mxu0 0
      %649 = vmatprep.subr.bf16.mxu0 0
      %650 = vmatpush2.bf16.msra.mxu0 0
      %651 = vmatprep.subr.bf16.mxu0 0
      %652 = vmatpush2.bf16.msra.mxu0 0
      %653 = vmatprep.subr.bf16.mxu0 0
      %654 = vmatpush2.bf16.msra.mxu0 0
      %655 = vmatprep.subr.bf16.mxu0 0
      %656 = vmatpush2.bf16.msra.mxu0 0
      %657 = vmatprep.subr.bf16.mxu0 0
      %658 = vmatpush2.bf16.msra.mxu0 0
      %659 = vmatprep.subr.bf16.mxu0 0
      %660 = vmatpush2.bf16.msra.mxu0 0
      %661 = vmatprep.subr.bf16.mxu0 0
      %662 = vmatpush2.bf16.msra.mxu0 0
      %663 = vmatprep.mubr.bf16.mxu0 0
      %664 = vmatmul.mubr.bf16.gmra.mxu0 %v571
      %v665 = vpop.f32.mrf.mxu0
      %v666 = vadd.f32 %v582, %v665
      %v667 = vpop.f32.mrf.mxu0
      %v668 = vpop.f32.mrf.mxu0
      %v669 = vadd.f32 %v582, %v668
      %v670 = vpop.f32.mrf.mxu0
      %671 = vmatprep.mubr.bf16.mxu0 0
      %672 = vmatmul.mubr.bf16.gmra.mxu0 %v572
      %v673 = vpop.f32.mrf.mxu0
      %v674 = vadd.f32 %v582, %v673
      %v675 = vpop.f32.mrf.mxu0
      %v676 = vpop.f32.mrf.mxu0
      %v677 = vadd.f32 %v582, %v676
      %v678 = vpop.f32.mrf.mxu0
      %679 = vmatprep.mubr.bf16.mxu0 0
      %680 = vmatmul.mubr.bf16.gmra.mxu0 %v573
      %v681 = vpop.f32.mrf.mxu0
      %v682 = vadd.f32 %v582, %v681
      %v683 = vpop.f32.mrf.mxu0
      %v684 = vpop.f32.mrf.mxu0
      %v685 = vadd.f32 %v582, %v684
      %v686 = vpop.f32.mrf.mxu0
      %687 = vmatprep.mubr.bf16.mxu0 0
      %688 = vmatmul.mubr.bf16.gmra.mxu0 %v574
      %v689 = vpop.f32.mrf.mxu0
      %v690 = vadd.f32 %v582, %v689
      %v691 = vpop.f32.mrf.mxu0
      %v692 = vpop.f32.mrf.mxu0
      %v693 = vadd.f32 %v582, %v692
      %v694 = vpop.f32.mrf.mxu0
      %695 = vmatprep.mubr.bf16.mxu0 0
      %696 = vmatmul.mubr.bf16.gmra.mxu0 %v575
      %v697 = vpop.f32.mrf.mxu0
      %v698 = vadd.f32 %v582, %v697
      %v699 = vpop.f32.mrf.mxu0
      %v700 = vpop.f32.mrf.mxu0
      %v701 = vadd.f32 %v582, %v700
      %v702 = vpop.f32.mrf.mxu0
      %703 = vmatprep.mubr.bf16.mxu0 0
      %704 = vmatmul.mubr.bf16.gmra.mxu0 %v576
      %v705 = vpop.f32.mrf.mxu0
      %v706 = vadd.f32 %v582, %v705
      %v707 = vpop.f32.mrf.mxu0
      %v708 = vpop.f32.mrf.mxu0
      %v709 = vadd.f32 %v582, %v708
      %v710 = vpop.f32.mrf.mxu0
      %711 = vmatprep.mubr.bf16.mxu0 0
      %712 = vmatmul.mubr.bf16.gmra.mxu0 %v577
      %v713 = vpop.f32.mrf.mxu0
      %v714 = vadd.f32 %v582, %v713
      %v715 = vpop.f32.mrf.mxu0
      %v716 = vpop.f32.mrf.mxu0
      %v717 = vadd.f32 %v582, %v716
      %v718 = vpop.f32.mrf.mxu0
      %719 = vmatprep.mubr.bf16.mxu0 0
      %720 = vmatmul.mubr.bf16.gmra.mxu0 %v578
      %v721 = vpop.f32.mrf.mxu0
      %v722 = vadd.f32 %v582, %v721
      %v723 = vpop.f32.mrf.mxu0
      %v724 = vpop.f32.mrf.mxu0
      %v725 = vadd.f32 %v582, %v724
      %v726 = vpop.f32.mrf.mxu0
      %727 = vdwg.mxu0
      %728 = vmax.xlane.f32.xlu0 %v666
      %v729 = vpop.xlane.xlu0 %728
      %730 = vmax.xlane.f32.xlu0 %v669
      %v731 = vpop.xlane.xlu0 %730
      %732 = vmax.xlane.f32.xlu0 %v674
      %v733 = vpop.xlane.xlu0 %732
      %734 = vmax.xlane.f32.xlu0 %v677
      %v735 = vpop.xlane.xlu0 %734
      %736 = vmax.xlane.f32.xlu0 %v682
      %v737 = vpop.xlane.xlu0 %736
      %738 = vmax.xlane.f32.xlu0 %v685
      %v739 = vpop.xlane.xlu0 %738
      %740 = vmax.xlane.f32.xlu0 %v690
      %v741 = vpop.xlane.xlu0 %740
      %742 = vmax.xlane.f32.xlu0 %v693
      %v743 = vpop.xlane.xlu0 %742
      %744 = vmax.xlane.f32.xlu0 %v698
      %v745 = vpop.xlane.xlu0 %744
      %746 = vmax.xlane.f32.xlu0 %v701
      %v747 = vpop.xlane.xlu0 %746
      %748 = vmax.xlane.f32.xlu0 %v706
      %v749 = vpop.xlane.xlu0 %748
      %750 = vmax.xlane.f32.xlu0 %v709
      %v751 = vpop.xlane.xlu0 %750
      %752 = vmax.xlane.f32.xlu0 %v714
      %v753 = vpop.xlane.xlu0 %752
      %754 = vmax.xlane.f32.xlu0 %v717
      %v755 = vpop.xlane.xlu0 %754
      %756 = vmax.xlane.f32.xlu0 %v722
      %v757 = vpop.xlane.xlu0 %756
      %758 = vmax.xlane.f32.xlu0 %v725
      %v759 = vpop.xlane.xlu0 %758
      %v760 = vsub.f32 %v666, %v729
      %v761 = vsub.f32 %v669, %v731
      %v762 = vsub.f32 %v674, %v733
      %v763 = vsub.f32 %v677, %v735
      %v764 = vsub.f32 %v682, %v737
      %v765 = vsub.f32 %v685, %v739
      %v766 = vsub.f32 %v690, %v741
      %v767 = vsub.f32 %v693, %v743
      %v768 = vsub.f32 %v698, %v745
      %v769 = vsub.f32 %v701, %v747
      %v770 = vsub.f32 %v706, %v749
      %v771 = vsub.f32 %v709, %v751
      %v772 = vsub.f32 %v714, %v753
      %v773 = vsub.f32 %v717, %v755
      %v774 = vsub.f32 %v722, %v757
      %v775 = vsub.f32 %v725, %v759
      %v776 = vmul.f32 %v760, 1.442695
      %v777 = vpow.pop %v776
      %v778 = vmul.f32 %v761, 1.442695
      %v779 = vpow.pop %v778
      %v780 = vmul.f32 %v762, 1.442695
      %v781 = vpow.pop %v780
      %v782 = vmul.f32 %v763, 1.442695
      %v783 = vpow.pop %v782
      %v784 = vmul.f32 %v764, 1.442695
      %v785 = vpow.pop %v784
      %v786 = vmul.f32 %v765, 1.442695
      %v787 = vpow.pop %v786
      %v788 = vmul.f32 %v766, 1.442695
      %v789 = vpow.pop %v788
      %v790 = vmul.f32 %v767, 1.442695
      %v791 = vpow.pop %v790
      %v792 = vmul.f32 %v768, 1.442695
      %v793 = vpow.pop %v792
      %v794 = vmul.f32 %v769, 1.442695
      %v795 = vpow.pop %v794
      %v796 = vmul.f32 %v770, 1.442695
      %v797 = vpow.pop %v796
      %v798 = vmul.f32 %v771, 1.442695
      %v799 = vpow.pop %v798
      %v800 = vmul.f32 %v772, 1.442695
      %v801 = vpow.pop %v800
      %v802 = vmul.f32 %v773, 1.442695
      %v803 = vpow.pop %v802
      %v804 = vmul.f32 %v774, 1.442695
      %v805 = vpow.pop %v804
      %v806 = vmul.f32 %v775, 1.442695
      %v807 = vpow.pop %v806
      %808 = vadd.xlane.f32.xlu0 %v777
      %v809 = vpop.xlane.xlu0 %808
      %810 = vadd.xlane.f32.xlu0 %v779
      %v811 = vpop.xlane.xlu0 %810
      %812 = vadd.xlane.f32.xlu0 %v781
      %v813 = vpop.xlane.xlu0 %812
      %814 = vadd.xlane.f32.xlu0 %v783
      %v815 = vpop.xlane.xlu0 %814
      %816 = vadd.xlane.f32.xlu0 %v785
      %v817 = vpop.xlane.xlu0 %816
      %818 = vadd.xlane.f32.xlu0 %v787
      %v819 = vpop.xlane.xlu0 %818
      %820 = vadd.xlane.f32.xlu0 %v789
      %v821 = vpop.xlane.xlu0 %820
      %822 = vadd.xlane.f32.xlu0 %v791
      %v823 = vpop.xlane.xlu0 %822
      %824 = vadd.xlane.f32.xlu0 %v793
      %v825 = vpop.xlane.xlu0 %824
      %826 = vadd.xlane.f32.xlu0 %v795
      %v827 = vpop.xlane.xlu0 %826
      %828 = vadd.xlane.f32.xlu0 %v797
      %v829 = vpop.xlane.xlu0 %828
      %830 = vadd.xlane.f32.xlu0 %v799
      %v831 = vpop.xlane.xlu0 %830
      %832 = vadd.xlane.f32.xlu0 %v801
      %v833 = vpop.xlane.xlu0 %832
      %834 = vadd.xlane.f32.xlu0 %v803
      %v835 = vpop.xlane.xlu0 %834
      %836 = vadd.xlane.f32.xlu0 %v805
      %v837 = vpop.xlane.xlu0 %836
      %838 = vadd.xlane.f32.xlu0 %v807
      %v839 = vpop.xlane.xlu0 %838
      %v840 = vrcp.pop %v809
      %v841 = vmul.f32 %v777, %v840
      %v842 = vrcp.pop %v811
      %v843 = vmul.f32 %v779, %v842
      %v844 = vrcp.pop %v813
      %v845 = vmul.f32 %v781, %v844
      %v846 = vrcp.pop %v815
      %v847 = vmul.f32 %v783, %v846
      %v848 = vrcp.pop %v817
      %v849 = vmul.f32 %v785, %v848
      %v850 = vrcp.pop %v819
      %v851 = vmul.f32 %v787, %v850
      %v852 = vrcp.pop %v821
      %v853 = vmul.f32 %v789, %v852
      %v854 = vrcp.pop %v823
      %v855 = vmul.f32 %v791, %v854
      %v856 = vrcp.pop %v825
      %v857 = vmul.f32 %v793, %v856
      %v858 = vrcp.pop %v827
      %v859 = vmul.f32 %v795, %v858
      %v860 = vrcp.pop %v829
      %v861 = vmul.f32 %v797, %v860
      %v862 = vrcp.pop %v831
      %v863 = vmul.f32 %v799, %v862
      %v864 = vrcp.pop %v833
      %v865 = vmul.f32 %v801, %v864
      %v866 = vrcp.pop %v835
      %v867 = vmul.f32 %v803, %v866
      %v868 = vrcp.pop %v837
      %v869 = vmul.f32 %v805, %v868
      %v870 = vrcp.pop %v839
      %v871 = vmul.f32 %v807, %v870
      %872 = vst [vmem:[%s172] sm:$0xff] %v841
      %873 = vst [vmem:[%s172 + $0x8] sm:$0xff] %v843
      %874 = vst [vmem:[%s172 + $0x10] sm:$0xff] %v845
      %875 = vst [vmem:[%s172 + $0x18] sm:$0xff] %v847
      %876 = vst [vmem:[%s172 + $0x20] sm:$0xff] %v849
      %877 = vst [vmem:[%s172 + $0x28] sm:$0xff] %v851
      %878 = vst [vmem:[%s172 + $0x30] sm:$0xff] %v853
      %879 = vst [vmem:[%s172 + $0x38] sm:$0xff] %v855
      %880 = vst [vmem:[%s172 + $0x40] sm:$0xff] %v857
      %881 = vst [vmem:[%s172 + $0x48] sm:$0xff] %v859
      %882 = vst [vmem:[%s172 + $0x50] sm:$0xff] %v861
      %883 = vst [vmem:[%s172 + $0x58] sm:$0xff] %v863
      %884 = vst [vmem:[%s172 + $0x60] sm:$0xff] %v865
      %885 = vst [vmem:[%s172 + $0x68] sm:$0xff] %v867
      %886 = vst [vmem:[%s172 + $0x70] sm:$0xff] %v869
      %887 = vst [vmem:[%s172 + $0x78] sm:$0xff] %v871
      %s888 = smul.u32 16, %s14
      %p889 = scmp.lt.s32.totalorder %s888, 31
      %s890 = scalar_select %p889, %s888, 31
      %s891 = smul.addr %s890, 8
      %s892 = scalar_lea.vmem %s3, %s891
      // Predicated region
      $region33: #{keypoint_classifier_forward.1} parent=31 // pred_check
        %p893 = pneg %p100
      $region34: #{keypoint_classifier_forward.1} parent=31 // pred_check_branch
        %895 = sbr.rel (%p893) target = $region36
      $region35: #{keypoint_classifier_forward.1} parent=31 // pred_region
        %s896 = smul.u32 16, %s14
      $region36: #{keypoint_classifier_forward.1} parent=31 // pred_fallthru
        _
    $region32: #{keypoint_classifier_forward.1} parent=5 // pred_fallthru
      _
    %p897 = scmp.le.s32.totalorder 2, %s9
    // Predicated region
    $region37: #{keypoint_classifier_forward.1} parent=5 // pred_check
      %p898 = pneg %p897
    $region38: #{keypoint_classifier_forward.1} parent=5 // pred_check_branch
      %900 = sbr.rel (%p898) target = $region40
    $region39: #{keypoint_classifier_forward.1} parent=5 // pred_region
      %s901 = ssub.s32 %s9, 2
      // Predicated region
      $region41: #{keypoint_classifier_forward.1} parent=39 // pred_check
        %p902 = pneg %p106
      $region42: #{keypoint_classifier_forward.1} parent=39 // pred_check_branch
        %904 = sbr.rel (%p902) target = $region44
      $region43: #{keypoint_classifier_forward.1} parent=39 // pred_region
        %s905 = smul.u32 16, %s15
        %p906 = scmp.lt.s32.totalorder %s905, 31
        %s907 = scalar_select %p906, %s905, 31
        %s908 = smul.addr %s907, 8
        %s909 = scalar_lea.vmem %s3, %s908
      $region44: #{keypoint_classifier_forward.1} parent=39 // pred_fallthru
        _
    $region40: #{keypoint_classifier_forward.1} parent=5 // pred_fallthru
      _
  $region6: #{keypoint_classifier_forward.1} parent=0 // loop_footer
    %s13 = sadd.s32 1, %s9
  $region7: #{keypoint_classifier_forward.1} parent=0 // loop_footer_branch
    %8 = sbr.rel target = $region3
  $region8: #{keypoint_classifier_forward.1} parent=0 // loop_exit
    _

</llo_original>
